<compile_context>
chip_gen: v5e
topology: v5e:2x2
jax: 0.10.0
libtpu: 0.0.40
codegen_flags: <defaults>
</compile_context>

<pallas_src>
import jax
import jax.numpy as jnp
from jax.experimental import pallas as pl
from jax.experimental.pallas import tpu as pltpu

# ----------------------------- model dims (small) -----------------------------
N_SPEAKER = 8     # n_speaker
IN_A = 64         # input_embedding_A
SHARED = 32       # shared_embedding
PROJ = 16         # projection_embedding
PRED_H1 = 16      # stands in for the hard-coded 512 in pred_module
PRED_H2 = 8       # stands in for the hard-coded 128 in pred_module
NUM_CLASSES = 5
BATCH = 8
LANES = 128       # lane-padded width of the parameter slabs / output

VMEM_SPEC = pl.BlockSpec(memory_space=pltpu.MemorySpace.VMEM)

# --- vector slab row layout (one (1,d) vector per row, lane-padded to 128) ----
VROW_BU, VROW_SU, VROW_TU = 0, 1, 2
VROW_BC, VROW_SC, VROW_TC = 3, 4, 5
VROW_B1, VROW_B2 = 6, 7
VROW_PB1, VROW_PB2, VROW_PB3 = 8, 9, 10
VSLAB_ROWS = 16                           # padded to a multiple of 8 sublanes

# --- weight slab sublane offsets (all multiples of 8, lane-padded to 128) -----
WOFF_WU = 0                               # (IN_A, SHARED)
WOFF_WC = WOFF_WU + IN_A                  # 64
WOFF_W1U = WOFF_WC + IN_A                 # 128  W1 rows for utt
WOFF_W1C = WOFF_W1U + SHARED              # 160  W1 rows for ctx
WOFF_W2 = WOFF_W1C + SHARED               # 192
WOFF_P1U = WOFF_W2 + PROJ                 # 208  pred-L1 rows for upd
WOFF_P1S = WOFF_P1U + SHARED              # 240  pred-L1 rows for speaker
WOFF_P2 = WOFF_P1S + N_SPEAKER            # 248
WOFF_P3 = WOFF_P2 + PRED_H1               # 264  (lane-padded to 128 outputs)
WSLAB_ROWS = WOFF_P3 + PRED_H2            # 272


def _softmax_lastdim(x):
    m = jnp.max(x, axis=-1, keepdims=True)
    e = jnp.exp(x - m)
    return e / jnp.sum(e, axis=-1, keepdims=True)


# --------------------------- single fused forward kernel -----------------------
def _fused_forward_kernel(uA_ref, cA_ref, spk_ref, w_ref, v_ref, o_ref):
    # One tiny load for all vectors (2 vregs), then value slices.
    vecs = v_ref[...]
    bu = vecs[VROW_BU:VROW_BU + 1, :SHARED]
    su = vecs[VROW_SU:VROW_SU + 1, :SHARED]
    tu = vecs[VROW_TU:VROW_TU + 1, :SHARED]
    bc = vecs[VROW_BC:VROW_BC + 1, :SHARED]
    sc = vecs[VROW_SC:VROW_SC + 1, :SHARED]
    tc = vecs[VROW_TC:VROW_TC + 1, :SHARED]
    b1 = vecs[VROW_B1:VROW_B1 + 1, :PROJ]
    b2 = vecs[VROW_B2:VROW_B2 + 1, :SHARED]
    pb1 = vecs[VROW_PB1:VROW_PB1 + 1, :PRED_H1]
    pb2 = vecs[VROW_PB2:VROW_PB2 + 1, :PRED_H2]
    pb3 = vecs[VROW_PB3:VROW_PB3 + 1, :]            # full 128 lanes (zero-padded)

    # Static ref slices of the packed weight slab (zero runtime cost to form the view).
    wu = w_ref[WOFF_WU:WOFF_WU + IN_A, :SHARED]
    wc = w_ref[WOFF_WC:WOFF_WC + IN_A, :SHARED]
    w1u = w_ref[WOFF_W1U:WOFF_W1U + SHARED, :PROJ]
    w1c = w_ref[WOFF_W1C:WOFF_W1C + SHARED, :PROJ]
    w2 = w_ref[WOFF_W2:WOFF_W2 + PROJ, :SHARED]
    p1u = w_ref[WOFF_P1U:WOFF_P1U + SHARED, :PRED_H1]
    p1s = w_ref[WOFF_P1S:WOFF_P1S + N_SPEAKER, :PRED_H1]
    p2 = w_ref[WOFF_P2:WOFF_P2 + PRED_H1, :PRED_H2]
    p3 = w_ref[WOFF_P3:WOFF_P3 + PRED_H2, :]        # full 128 lanes (zero-padded)

    # Feature projections: Linear -> ReLU -> BatchNorm1d(eval) folded to scale/shift.
    h_utt = jnp.maximum(
        jnp.dot(uA_ref[...], wu, preferred_element_type=jnp.float32) + bu, 0.0)
    h_utt = h_utt * su + tu

    h_ctx = jnp.maximum(
        jnp.dot(cA_ref[...], wc, preferred_element_type=jnp.float32) + bc, 0.0)
    h_ctx = h_ctx * sc + tc

    # attention_aggregator: softmax(cat(utt, ctx) @ W1 + b1) via row-split W1 (no concat),
    # then softmax(. @ W2 + b2).
    att_logits = (jnp.dot(h_utt, w1u, preferred_element_type=jnp.float32)
                  + jnp.dot(h_ctx, w1c, preferred_element_type=jnp.float32)
                  + b1)
    att = _softmax_lastdim(att_logits)
    gate = _softmax_lastdim(
        jnp.dot(att, w2, preferred_element_type=jnp.float32) + b2)

    upd = h_utt * gate

    # pred_module: first Linear's cat(upd, spk) realized as a split matmul; pred BNs are
    # pre-folded into the Linear weights; Dropout = identity (eval).
    h = (jnp.dot(upd, p1u, preferred_element_type=jnp.float32)
         + jnp.dot(spk_ref[...], p1s, preferred_element_type=jnp.float32)
         + pb1)
    h = jnp.maximum(h, 0.0)
    h = jnp.maximum(
        jnp.dot(h, p2, preferred_element_type=jnp.float32) + pb2, 0.0)
    # Lane-dense full-width store; columns >= NUM_CLASSES are exact zeros.
    o_ref[...] = jnp.dot(h, p3, preferred_element_type=jnp.float32) + pb3


def forward_pallas(prepped, uA, cA, spk):
    wslab, vslab = prepped
    n = uA.shape[0]
    flops = 2 * n * (IN_A * SHARED * 2 + SHARED * PROJ * 2 + PROJ * SHARED
                     + SHARED * PRED_H1 + N_SPEAKER * PRED_H1
                     + PRED_H1 * PRED_H2 + PRED_H2 * LANES)
    bytes_accessed = 4 * (WSLAB_ROWS * LANES + VSLAB_ROWS * LANES
                          + n * (2 * IN_A + N_SPEAKER) + n * LANES)
    out = pl.pallas_call(
        _fused_forward_kernel,
        out_shape=jax.ShapeDtypeStruct((n, LANES), jnp.float32),
        in_specs=[VMEM_SPEC] * 5,
        out_specs=VMEM_SPEC,
        compiler_params=pltpu.CompilerParams(),
        cost_estimate=pl.CostEstimate(
            flops=int(flops),
            transcendentals=int(n * (PROJ + SHARED)),
            bytes_accessed=int(bytes_accessed)),
    )(uA, cA, spk, wslab, vslab)
    return out[:, :NUM_CLASSES]


# ------------------------------- parameter setup -------------------------------
def _linear(key, d_in, d_out, scale=0.1):
    kw, kb = jax.random.split(key)
    w = jax.random.normal(kw, (d_in, d_out), jnp.float32) * scale   # (in, out) layout
    b = jax.random.normal(kb, (1, d_out), jnp.float32) * scale
    return w, b


def _bn(key, d):
    k1, k2, k3, k4 = jax.random.split(key, 4)
    gamma = 1.0 + 0.1 * jax.random.normal(k1, (1, d), jnp.float32)
    beta = 0.1 * jax.random.normal(k2, (1, d), jnp.float32)
    mean = 0.1 * jax.random.normal(k3, (1, d), jnp.float32)
    var = 1.0 + 0.1 * jax.random.uniform(k4, (1, d), jnp.float32)
    return gamma, beta, mean, var


def make_params(key):
    keys = jax.random.split(key, 12)
    p = {}
    p["ctx_share"] = _linear(keys[0], IN_A, SHARED)
    p["utt_share"] = _linear(keys[1], IN_A, SHARED)
    p["bn_ctx"] = _bn(keys[2], SHARED)
    p["bn_utt"] = _bn(keys[3], SHARED)
    p["gate1"] = _linear(keys[4], 2 * SHARED, PROJ)
    p["gate2"] = _linear(keys[5], PROJ, SHARED)
    dims = [SHARED + N_SPEAKER, PRED_H1, PRED_H2, NUM_CLASSES]
    p["pred_lin"] = [_linear(keys[6 + i], dims[i], dims[i + 1]) for i in range(3)]
    p["pred_bn"] = [_bn(keys[9 + i], dims[i + 1]) for i in range(2)]  # no BN after last Linear
    return p


def prepare_params(p, eps=1e-5):
    """One-time folding / splitting / packing so the hot path is a single 5-operand pallas_call."""
    def fold(bn):
        gamma, beta, mean, var = bn
        s = gamma / jnp.sqrt(var + eps)
        return s, beta - mean * s

    wu, bu = p["utt_share"]
    wc, bc = p["ctx_share"]
    su, tu = fold(p["bn_utt"])
    sc, tc = fold(p["bn_ctx"])

    w1, b1 = p["gate1"]           # (2*SHARED, PROJ): rows [utt | ctx]
    w2, b2 = p["gate2"]

    # pred layer 1/2: Linear -> BN -> ReLU  => fold BN into the Linear (exact in eval mode)
    pw1, pb1 = p["pred_lin"][0]
    s1, t1 = fold(p["pred_bn"][0])
    pw1f, pb1f = pw1 * s1, pb1 * s1 + t1
    pw2, pb2 = p["pred_lin"][1]
    s2, t2 = fold(p["pred_bn"][1])
    pw2f, pb2f = pw2 * s2, pb2 * s2 + t2
    pw3, pb3 = p["pred_lin"][2]

    def pad_lanes(x):
        return jnp.pad(x, ((0, 0), (0, LANES - x.shape[1])))

    # Weight slab: 9 matrices sublane-stacked, each lane-padded to 128.
    wslab = jnp.concatenate([
        pad_lanes(wu),                 # WOFF_WU
        pad_lanes(wc),                 # WOFF_WC
        pad_lanes(w1[:SHARED]),        # WOFF_W1U  (W1 rows consuming utt)
        pad_lanes(w1[SHARED:]),        # WOFF_W1C  (W1 rows consuming ctx)
        pad_lanes(w2),                 # WOFF_W2
        pad_lanes(pw1f[:SHARED]),      # WOFF_P1U  (pred-L1 rows consuming upd)
        pad_lanes(pw1f[SHARED:]),      # WOFF_P1S  (pred-L1 rows consuming speaker)
        pad_lanes(pw2f),               # WOFF_P2
        pad_lanes(pw3),                # WOFF_P3   (last layer zero-padded to 128 outputs)
    ], axis=0)
    assert wslab.shape == (WSLAB_ROWS, LANES)

    # Vector slab: one row per bias / BN scale / BN shift, lane-padded to 128.
    rows = [bu, su, tu, bc, sc, tc, b1, b2, pb1f, pb2f, pb3]
    vslab = jnp.concatenate([pad_lanes(r) for r in rows], axis=0)
    vslab = jnp.pad(vslab, ((0, VSLAB_ROWS - vslab.shape[0]), (0, 0)))
    assert vslab.shape == (VSLAB_ROWS, LANES)

    return wslab, vslab


# --------------------------- pure-JAX reference check ---------------------------
def forward_reference(p, uA, cA, spk, eps=1e-5):
    def bn(x, bnp):
        gamma, beta, mean, var = bnp
        return (x - mean) / jnp.sqrt(var + eps) * gamma + beta

    wc, bc = p["ctx_share"]
    wu, bu = p["utt_share"]
    shared_ctx = bn(jnp.maximum(cA @ wc + bc, 0.0), p["bn_ctx"])
    shared_utt = bn(jnp.maximum(uA @ wu + bu, 0.0), p["bn_utt"])

    w1, b1 = p["gate1"]
    w2, b2 = p["gate2"]
    att = jax.nn.softmax(jnp.concatenate([shared_utt, shared_ctx], axis=1) @ w1 + b1, axis=1)
    gate = jax.nn.softmax(att @ w2 + b2, axis=1)
    upd = shared_utt * gate

    h = jnp.concatenate([upd, spk], axis=1)
    for i in range(2):
        w, b = p["pred_lin"][i]
        h = jnp.maximum(bn(h @ w + b, p["pred_bn"][i]), 0.0)
    w, b = p["pred_lin"][2]
    return h @ w + b


# ------------------------------------ main --------------------------------------
if __name__ == "__main__":
    key = jax.random.PRNGKey(0)
    kp, k1, k2, k3 = jax.random.split(key, 4)
    params = make_params(kp)
    prepped = prepare_params(params)          # one-time fold/split/pack, outside the hot path

    uA = jax.random.normal(k1, (BATCH, IN_A), jnp.float32)
    cA = jax.random.normal(k2, (BATCH, IN_A), jnp.float32)
    spk = jax.nn.one_hot(
        jax.random.randint(k3, (BATCH,), 0, N_SPEAKER), N_SPEAKER, dtype=jnp.float32)

    out = forward_pallas(prepped, uA, cA, spk)
    out = jax.block_until_ready(out)
    assert out.shape == (BATCH, NUM_CLASSES)

    ref = jax.block_until_ready(forward_reference(params, uA, cA, spk))
    assert jnp.allclose(out, ref, rtol=2e-3, atol=2e-3), (out, ref)

    print("KERNEL_OK")
</pallas_src>

<mosaic_0001>
module attributes {stable_mosaic.version = 11 : i64} {
  func.func @_fused_forward_kernel(%arg0: memref<8x64xf32, #tpu.memory_space<vmem>>, %arg1: memref<8x64xf32, #tpu.memory_space<vmem>>, %arg2: memref<8x8xf32, #tpu.memory_space<vmem>>, %arg3: memref<272x128xf32, #tpu.memory_space<vmem>>, %arg4: memref<16x128xf32, #tpu.memory_space<vmem>>, %arg5: memref<8x128xf32, #tpu.memory_space<vmem>>) attributes {dimension_semantics = [], scalar_prefetch = 0 : i64, scratch_operands = 0 : i64, tpu.core_type = #tpu.core_type<tc>} {
    %c0 = arith.constant 0 : index
    %c0_0 = arith.constant 0 : index
    %0 = vector.load %arg4[%c0, %c0_0] : memref<16x128xf32, #tpu.memory_space<vmem>>, vector<16x128xf32>
    %1 = vector.extract_strided_slice %0 {offsets = [0, 0], sizes = [1, 32], strides = [1, 1]} : vector<16x128xf32> to vector<1x32xf32>
    %2 = vector.extract_strided_slice %0 {offsets = [1, 0], sizes = [1, 32], strides = [1, 1]} : vector<16x128xf32> to vector<1x32xf32>
    %3 = vector.extract_strided_slice %0 {offsets = [2, 0], sizes = [1, 32], strides = [1, 1]} : vector<16x128xf32> to vector<1x32xf32>
    %4 = vector.extract_strided_slice %0 {offsets = [3, 0], sizes = [1, 32], strides = [1, 1]} : vector<16x128xf32> to vector<1x32xf32>
    %5 = vector.extract_strided_slice %0 {offsets = [4, 0], sizes = [1, 32], strides = [1, 1]} : vector<16x128xf32> to vector<1x32xf32>
    %6 = vector.extract_strided_slice %0 {offsets = [5, 0], sizes = [1, 32], strides = [1, 1]} : vector<16x128xf32> to vector<1x32xf32>
    %7 = vector.extract_strided_slice %0 {offsets = [6, 0], sizes = [1, 16], strides = [1, 1]} : vector<16x128xf32> to vector<1x16xf32>
    %8 = vector.extract_strided_slice %0 {offsets = [7, 0], sizes = [1, 32], strides = [1, 1]} : vector<16x128xf32> to vector<1x32xf32>
    %9 = vector.extract_strided_slice %0 {offsets = [8, 0], sizes = [1, 16], strides = [1, 1]} : vector<16x128xf32> to vector<1x16xf32>
    %10 = vector.extract_strided_slice %0 {offsets = [9, 0], sizes = [1, 8], strides = [1, 1]} : vector<16x128xf32> to vector<1x8xf32>
    %11 = vector.extract_strided_slice %0 {offsets = [10, 0], sizes = [1, 128], strides = [1, 1]} : vector<16x128xf32> to vector<1x128xf32>
    %c0_1 = arith.constant 0 : index
    %c0_2 = arith.constant 0 : index
    %12 = vector.load %arg3[%c0_1, %c0_2] : memref<272x128xf32, #tpu.memory_space<vmem>>, vector<64x32xf32>
    %c64 = arith.constant 64 : index
    %c0_3 = arith.constant 0 : index
    %13 = vector.load %arg3[%c64, %c0_3] : memref<272x128xf32, #tpu.memory_space<vmem>>, vector<64x32xf32>
    %c128 = arith.constant 128 : index
    %c0_4 = arith.constant 0 : index
    %14 = vector.load %arg3[%c128, %c0_4] : memref<272x128xf32, #tpu.memory_space<vmem>>, vector<32x16xf32>
    %c160 = arith.constant 160 : index
    %c0_5 = arith.constant 0 : index
    %15 = vector.load %arg3[%c160, %c0_5] : memref<272x128xf32, #tpu.memory_space<vmem>>, vector<32x16xf32>
    %c192 = arith.constant 192 : index
    %c0_6 = arith.constant 0 : index
    %16 = vector.load %arg3[%c192, %c0_6] : memref<272x128xf32, #tpu.memory_space<vmem>>, vector<16x32xf32>
    %c208 = arith.constant 208 : index
    %c0_7 = arith.constant 0 : index
    %17 = vector.load %arg3[%c208, %c0_7] : memref<272x128xf32, #tpu.memory_space<vmem>>, vector<32x16xf32>
    %c240 = arith.constant 240 : index
    %c0_8 = arith.constant 0 : index
    %18 = vector.load %arg3[%c240, %c0_8] : memref<272x128xf32, #tpu.memory_space<vmem>>, vector<8x16xf32>
    %c248 = arith.constant 248 : index
    %c0_9 = arith.constant 0 : index
    %19 = vector.load %arg3[%c248, %c0_9] : memref<272x128xf32, #tpu.memory_space<vmem>>, vector<16x8xf32>
    %c264 = arith.constant 264 : index
    %c0_10 = arith.constant 0 : index
    %20 = vector.load %arg3[%c264, %c0_10] : memref<272x128xf32, #tpu.memory_space<vmem>>, vector<8x128xf32>
    %c0_11 = arith.constant 0 : index
    %c0_12 = arith.constant 0 : index
    %21 = vector.load %arg0[%c0_11, %c0_12] : memref<8x64xf32, #tpu.memory_space<vmem>>, vector<8x64xf32>
    %cst = arith.constant dense<0.000000e+00> : vector<8x32xf32>
    %22 = tpu.matmul %21, %12, %cst {dimension_numbers = #tpu.dot_dimension_numbers<[1], [0], [0], [1], [0, 0, 1, 1], [], []>} : vector<8x64xf32>, vector<64x32xf32>, vector<8x32xf32> -> vector<8x32xf32>
    %23 = vector.broadcast %1 : vector<1x32xf32> to vector<8x32xf32>
    %24 = arith.addf %22, %23 : vector<8x32xf32>
    %cst_13 = arith.constant 0.000000e+00 : f32
    %25 = vector.broadcast %cst_13 : f32 to vector<8x32xf32>
    %26 = arith.maximumf %24, %25 : vector<8x32xf32>
    %27 = vector.broadcast %2 : vector<1x32xf32> to vector<8x32xf32>
    %28 = arith.mulf %26, %27 : vector<8x32xf32>
    %29 = vector.broadcast %3 : vector<1x32xf32> to vector<8x32xf32>
    %30 = arith.addf %28, %29 : vector<8x32xf32>
    %c0_14 = arith.constant 0 : index
    %c0_15 = arith.constant 0 : index
    %31 = vector.load %arg1[%c0_14, %c0_15] : memref<8x64xf32, #tpu.memory_space<vmem>>, vector<8x64xf32>
    %cst_16 = arith.constant dense<0.000000e+00> : vector<8x32xf32>
    %32 = tpu.matmul %31, %13, %cst_16 {dimension_numbers = #tpu.dot_dimension_numbers<[1], [0], [0], [1], [0, 0, 1, 1], [], []>} : vector<8x64xf32>, vector<64x32xf32>, vector<8x32xf32> -> vector<8x32xf32>
    %33 = vector.broadcast %4 : vector<1x32xf32> to vector<8x32xf32>
    %34 = arith.addf %32, %33 : vector<8x32xf32>
    %cst_17 = arith.constant 0.000000e+00 : f32
    %35 = vector.broadcast %cst_17 : f32 to vector<8x32xf32>
    %36 = arith.maximumf %34, %35 : vector<8x32xf32>
    %37 = vector.broadcast %5 : vector<1x32xf32> to vector<8x32xf32>
    %38 = arith.mulf %36, %37 : vector<8x32xf32>
    %39 = vector.broadcast %6 : vector<1x32xf32> to vector<8x32xf32>
    %40 = arith.addf %38, %39 : vector<8x32xf32>
    %cst_18 = arith.constant dense<0.000000e+00> : vector<8x16xf32>
    %41 = tpu.matmul %30, %14, %cst_18 {dimension_numbers = #tpu.dot_dimension_numbers<[1], [0], [0], [1], [0, 0, 1, 1], [], []>} : vector<8x32xf32>, vector<32x16xf32>, vector<8x16xf32> -> vector<8x16xf32>
    %cst_19 = arith.constant dense<0.000000e+00> : vector<8x16xf32>
    %42 = tpu.matmul %40, %15, %cst_19 {dimension_numbers = #tpu.dot_dimension_numbers<[1], [0], [0], [1], [0, 0, 1, 1], [], []>} : vector<8x32xf32>, vector<32x16xf32>, vector<8x16xf32> -> vector<8x16xf32>
    %43 = arith.addf %41, %42 : vector<8x16xf32>
    %44 = vector.broadcast %7 : vector<1x16xf32> to vector<8x16xf32>
    %45 = arith.addf %43, %44 : vector<8x16xf32>
    %cst_20 = arith.constant dense<0xFF800000> : vector<8xf32>
    %46 = vector.multi_reduction <maximumf>, %45, %cst_20 [1] : vector<8x16xf32> to vector<8xf32>
    %47 = vector.shape_cast %46 : vector<8xf32> to vector<8x1xf32>
    %48 = vector.broadcast %47 : vector<8x1xf32> to vector<8x16xf32>
    %49 = arith.subf %45, %48 : vector<8x16xf32>
    %50 = math.exp %49 : vector<8x16xf32>
    %cst_21 = arith.constant dense<0.000000e+00> : vector<8xf32>
    %51 = vector.multi_reduction <add>, %50, %cst_21 [1] : vector<8x16xf32> to vector<8xf32>
    %52 = vector.shape_cast %51 : vector<8xf32> to vector<8x1xf32>
    %53 = vector.broadcast %52 : vector<8x1xf32> to vector<8x16xf32>
    %54 = arith.divf %50, %53 : vector<8x16xf32>
    %cst_22 = arith.constant dense<0.000000e+00> : vector<8x32xf32>
    %55 = tpu.matmul %54, %16, %cst_22 {dimension_numbers = #tpu.dot_dimension_numbers<[1], [0], [0], [1], [0, 0, 1, 1], [], []>} : vector<8x16xf32>, vector<16x32xf32>, vector<8x32xf32> -> vector<8x32xf32>
    %56 = vector.broadcast %8 : vector<1x32xf32> to vector<8x32xf32>
    %57 = arith.addf %55, %56 : vector<8x32xf32>
    %cst_23 = arith.constant dense<0xFF800000> : vector<8xf32>
    %58 = vector.multi_reduction <maximumf>, %57, %cst_23 [1] : vector<8x32xf32> to vector<8xf32>
    %59 = vector.shape_cast %58 : vector<8xf32> to vector<8x1xf32>
    %60 = vector.broadcast %59 : vector<8x1xf32> to vector<8x32xf32>
    %61 = arith.subf %57, %60 : vector<8x32xf32>
    %62 = math.exp %61 : vector<8x32xf32>
    %cst_24 = arith.constant dense<0.000000e+00> : vector<8xf32>
    %63 = vector.multi_reduction <add>, %62, %cst_24 [1] : vector<8x32xf32> to vector<8xf32>
    %64 = vector.shape_cast %63 : vector<8xf32> to vector<8x1xf32>
    %65 = vector.broadcast %64 : vector<8x1xf32> to vector<8x32xf32>
    %66 = arith.divf %62, %65 : vector<8x32xf32>
    %67 = arith.mulf %30, %66 : vector<8x32xf32>
    %cst_25 = arith.constant dense<0.000000e+00> : vector<8x16xf32>
    %68 = tpu.matmul %67, %17, %cst_25 {dimension_numbers = #tpu.dot_dimension_numbers<[1], [0], [0], [1], [0, 0, 1, 1], [], []>} : vector<8x32xf32>, vector<32x16xf32>, vector<8x16xf32> -> vector<8x16xf32>
    %c0_26 = arith.constant 0 : index
    %c0_27 = arith.constant 0 : index
    %69 = vector.load %arg2[%c0_26, %c0_27] : memref<8x8xf32, #tpu.memory_space<vmem>>, vector<8x8xf32>
    %cst_28 = arith.constant dense<0.000000e+00> : vector<8x16xf32>
    %70 = tpu.matmul %69, %18, %cst_28 {dimension_numbers = #tpu.dot_dimension_numbers<[1], [0], [0], [1], [0, 0, 1, 1], [], []>} : vector<8x8xf32>, vector<8x16xf32>, vector<8x16xf32> -> vector<8x16xf32>
    %71 = arith.addf %68, %70 : vector<8x16xf32>
    %72 = vector.broadcast %9 : vector<1x16xf32> to vector<8x16xf32>
    %73 = arith.addf %71, %72 : vector<8x16xf32>
    %cst_29 = arith.constant 0.000000e+00 : f32
    %74 = vector.broadcast %cst_29 : f32 to vector<8x16xf32>
    %75 = arith.maximumf %73, %74 : vector<8x16xf32>
    %cst_30 = arith.constant dense<0.000000e+00> : vector<8x8xf32>
    %76 = tpu.matmul %75, %19, %cst_30 {dimension_numbers = #tpu.dot_dimension_numbers<[1], [0], [0], [1], [0, 0, 1, 1], [], []>} : vector<8x16xf32>, vector<16x8xf32>, vector<8x8xf32> -> vector<8x8xf32>
    %77 = vector.broadcast %10 : vector<1x8xf32> to vector<8x8xf32>
    %78 = arith.addf %76, %77 : vector<8x8xf32>
    %cst_31 = arith.constant 0.000000e+00 : f32
    %79 = vector.broadcast %cst_31 : f32 to vector<8x8xf32>
    %80 = arith.maximumf %78, %79 : vector<8x8xf32>
    %cst_32 = arith.constant dense<0.000000e+00> : vector<8x128xf32>
    %81 = tpu.matmul %80, %20, %cst_32 {dimension_numbers = #tpu.dot_dimension_numbers<[1], [0], [0], [1], [0, 0, 1, 1], [], []>} : vector<8x8xf32>, vector<8x128xf32>, vector<8x128xf32> -> vector<8x128xf32>
    %82 = vector.broadcast %11 : vector<1x128xf32> to vector<8x128xf32>
    %83 = arith.addf %81, %82 : vector<8x128xf32>
    %c0_33 = arith.constant 0 : index
    %c0_34 = arith.constant 0 : index
    %84 = vector.load %arg5[%c0_33, %c0_34] : memref<8x128xf32, #tpu.memory_space<vmem>>, vector<8x128xf32>
    tpu.vector_store %arg5[%c0_33, %c0_34], %83 {strides = array<i32>} : memref<8x128xf32, #tpu.memory_space<vmem>>, vector<8x128xf32>,
    return
  }
}

</mosaic_0001>

<llo_original>
// kernel: tpu_custom_call.1
$region0: #{tpu_custom_call.1}
  #allocation0 [shape = 'u32[]', space=smem, size = 0x4, offset = 0x4, fixed_abs, tag = 'smem constant byte address 0x4 - core index']
  #allocation1 [shape = 'u32[72,128]{1,0:T(1,128)}', space=vmem, size = 0x9000, scoped, tag = 'internal scratch']
  %s0 = inlined_call_operand.hbm [shape: f32[8,64], index: 0, kind: input, shape index: {}]
  %s1 = inlined_call_operand.hbm [shape: f32[8,64], index: 1, kind: input, shape index: {}]
  %s2 = inlined_call_operand.hbm [shape: f32[8,8], index: 2, kind: input, shape index: {}]
  %s3 = inlined_call_operand.hbm [shape: f32[272,128], index: 3, kind: input, shape index: {}]
  %s4 = inlined_call_operand.hbm [shape: f32[16,128], index: 4, kind: input, shape index: {}]
  %s5 = inlined_call_operand.hbm [shape: f32[8,128], index: 5, kind: output, shape index: {}]
  %s6 = sld [smem:[#allocation0]]
  $region50: #{tpu_custom_call.1} parent=0
    _
  %s8 = ssub.s32 1, %s6
  %s9 = scalar_select 0, %s8, %s6
  $region1: #{tpu_custom_call.1} parent=0
    #allocation2 [shape = 'u8[4096]{0}', space=vmem, size = 0x1000, scoped, tag = 'input window, operand 0, single buffered']
    #allocation3 [shape = 's32[1]{0}', space=sflag, size = 0x4, scoped, tag = 'scoped memory for tpu_custom_call.1']
    #allocation4 [shape = 's32[1]{0}', space=sflag, size = 0x4, scoped, tag = 'scoped memory for tpu_custom_call.1']
    #allocation5 [shape = 'u8[4096]{0}', space=vmem, size = 0x1000, scoped, tag = 'input window, operand 1, single buffered']
    #allocation6 [shape = 's32[1]{0}', space=sflag, size = 0x4, scoped, tag = 'scoped memory for tpu_custom_call.1']
    #allocation7 [shape = 'u8[4096]{0}', space=vmem, size = 0x1000, scoped, tag = 'input window, operand 2, single buffered']
    #allocation8 [shape = 'u8[139264]{0}', space=vmem, size = 0x22000, scoped, tag = 'input window, operand 3, single buffered']
    #allocation9 [shape = 's32[1]{0}', space=sflag, size = 0x4, scoped, tag = 'scoped memory for tpu_custom_call.1']
    #allocation10 [shape = 'u8[8192]{0}', space=vmem, size = 0x2000, scoped, tag = 'input window, operand 4, single buffered']
    #allocation11 [shape = 'u8[4096]{0}', space=vmem, size = 0x1000, scoped, tag = 'output window, operand 0, single buffered']
    %10 = vsyncpa [#allocation3], 0
    %11 = vsyncpa [#allocation6], 0
    %12 = vsyncpa [#allocation9], 0
    %13 = vsyncpa [#allocation4], 0
    // Predicated region
    $region2: #{tpu_custom_call.1} parent=1 // pred_check
      _
    $region3: #{tpu_custom_call.1} parent=1 // pred_check_branch
      %15 = sbr.rel (0) target = $region5
    $region4: #{tpu_custom_call.1} parent=1 // pred_region
      %17 = vsyncadd [#allocation3], 0
      %s19 = sshll.u32 %s0, 4
      %s20 = int_to_ptr.hbm [resolvable:$true] %s19
      %s21 = sshll.u32 [#allocation2], 4
      %s22 = int_to_ptr.vmem [resolvable:$true] %s21
      %24 = dma.hbm_to_vmem [thread:$0]  %s20, 128, %s22, [#allocation3]
    $region5: #{tpu_custom_call.1} parent=1 // pred_fallthru
      _
    // Predicated region
    $region6: #{tpu_custom_call.1} parent=1 // pred_check
      _
    $region7: #{tpu_custom_call.1} parent=1 // pred_check_branch
      %26 = sbr.rel (0) target = $region9
    $region8: #{tpu_custom_call.1} parent=1 // pred_region
      %28 = vsyncadd [#allocation6], 0
      %s30 = sshll.u32 %s1, 4
      %s31 = int_to_ptr.hbm [resolvable:$true] %s30
      %s32 = sshll.u32 [#allocation5], 4
      %s33 = int_to_ptr.vmem [resolvable:$true] %s32
      %35 = dma.hbm_to_vmem [thread:$0]  %s31, 128, %s33, [#allocation6]
    $region9: #{tpu_custom_call.1} parent=1 // pred_fallthru
      _
    // Predicated region
    $region10: #{tpu_custom_call.1} parent=1 // pred_check
      _
    $region11: #{tpu_custom_call.1} parent=1 // pred_check_branch
      %37 = sbr.rel (0) target = $region13
    $region12: #{tpu_custom_call.1} parent=1 // pred_region
      %39 = vsyncadd [#allocation6], 0
      %s41 = sshll.u32 %s2, 4
      %s42 = int_to_ptr.hbm [resolvable:$true] %s41
      %s43 = sshll.u32 [#allocation7], 4
      %s44 = int_to_ptr.vmem [resolvable:$true] %s43
      %46 = dma.hbm_to_vmem [thread:$0]  %s42, 128, %s44, [#allocation6]
    $region13: #{tpu_custom_call.1} parent=1 // pred_fallthru
      _
    // Predicated region
    $region14: #{tpu_custom_call.1} parent=1 // pred_check
      _
    $region15: #{tpu_custom_call.1} parent=1 // pred_check_branch
      %48 = sbr.rel (0) target = $region17
    $region16: #{tpu_custom_call.1} parent=1 // pred_region
      %50 = vsyncadd [#allocation9], 0
      %s51 = sshll.u32 %s3, 4
      %s52 = int_to_ptr.hbm [resolvable:$true] %s51
      %s53 = sshll.u32 [#allocation8], 4
      %s54 = int_to_ptr.vmem [resolvable:$true] %s53
      %59 = dma.hbm_to_vmem [thread:$0]  %s52, 4352, %s54, [#allocation9], 128, 128, 8
    $region17: #{tpu_custom_call.1} parent=1 // pred_fallthru
      _
    // Predicated region
    $region18: #{tpu_custom_call.1} parent=1 // pred_check
      _
    $region19: #{tpu_custom_call.1} parent=1 // pred_check_branch
      %61 = sbr.rel (0) target = $region21
    $region20: #{tpu_custom_call.1} parent=1 // pred_region
      %63 = vsyncadd [#allocation9], 0
      %s64 = sshll.u32 %s4, 4
      %s65 = int_to_ptr.hbm [resolvable:$true] %s64
      %s66 = sshll.u32 [#allocation10], 4
      %s67 = int_to_ptr.vmem [resolvable:$true] %s66
      %72 = dma.hbm_to_vmem [thread:$0]  %s65, 256, %s67, [#allocation9], 128, 128, 8
    $region21: #{tpu_custom_call.1} parent=1 // pred_fallthru
      _
    // Predicated region
    $region22: #{tpu_custom_call.1} parent=1 // pred_check
      _
    $region23: #{tpu_custom_call.1} parent=1 // pred_check_branch
      %74 = sbr.rel (0) target = $region25
    $region24: #{tpu_custom_call.1} parent=1 // pred_region
      %76 = dma.done [#allocation3], 128
    $region25: #{tpu_custom_call.1} parent=1 // pred_fallthru
      _
    // Predicated region
    $region26: #{tpu_custom_call.1} parent=1 // pred_check
      _
    $region27: #{tpu_custom_call.1} parent=1 // pred_check_branch
      %78 = sbr.rel (0) target = $region29
    $region28: #{tpu_custom_call.1} parent=1 // pred_region
      %80 = dma.done [#allocation6], 128
    $region29: #{tpu_custom_call.1} parent=1 // pred_fallthru
      _
    // Predicated region
    $region30: #{tpu_custom_call.1} parent=1 // pred_check
      _
    $region31: #{tpu_custom_call.1} parent=1 // pred_check_branch
      %82 = sbr.rel (0) target = $region33
    $region32: #{tpu_custom_call.1} parent=1 // pred_region
      %84 = dma.done [#allocation6], 128
    $region33: #{tpu_custom_call.1} parent=1 // pred_fallthru
      _
    // Predicated region
    $region34: #{tpu_custom_call.1} parent=1 // pred_check
      _
    $region35: #{tpu_custom_call.1} parent=1 // pred_check_branch
      %86 = sbr.rel (0) target = $region37
    $region36: #{tpu_custom_call.1} parent=1 // pred_region
      %88 = dma.done [#allocation9], 4352
    $region37: #{tpu_custom_call.1} parent=1 // pred_fallthru
      _
    // Predicated region
    $region38: #{tpu_custom_call.1} parent=1 // pred_check
      _
    $region39: #{tpu_custom_call.1} parent=1 // pred_check_branch
      %90 = sbr.rel (0) target = $region41
    $region40: #{tpu_custom_call.1} parent=1 // pred_region
      %92 = dma.done [#allocation9], 256
    $region41: #{tpu_custom_call.1} parent=1 // pred_fallthru
      _
    %v93 = vld [vmem:[#allocation10] sm:$0xff]
    %v94 = vld [vmem:[#allocation10 + $0x8] sm:$0xff]
    %v95 = vld [vmem:[#allocation8] sm:$0xff]
    %v96 = vld [vmem:[#allocation8 + $0x8] sm:$0xff]
    %v97 = vld [vmem:[#allocation8 + $0x10] sm:$0xff]
    %v98 = vld [vmem:[#allocation8 + $0x18] sm:$0xff]
    %v99 = vld [vmem:[#allocation8 + $0x20] sm:$0xff]
    %v100 = vld [vmem:[#allocation8 + $0x28] sm:$0xff]
    %v101 = vld [vmem:[#allocation8 + $0x30] sm:$0xff]
    %v102 = vld [vmem:[#allocation8 + $0x38] sm:$0xff]
    %v103 = vld [vmem:[#allocation8 + $0x40] sm:$0xff]
    %v104 = vld [vmem:[#allocation8 + $0x48] sm:$0xff]
    %v105 = vld [vmem:[#allocation8 + $0x50] sm:$0xff]
    %v106 = vld [vmem:[#allocation8 + $0x58] sm:$0xff]
    %v107 = vld [vmem:[#allocation8 + $0x60] sm:$0xff]
    %v108 = vld [vmem:[#allocation8 + $0x68] sm:$0xff]
    %v109 = vld [vmem:[#allocation8 + $0x70] sm:$0xff]
    %v110 = vld [vmem:[#allocation8 + $0x78] sm:$0xff]
    %v111 = vld [vmem:[#allocation8 + $0x80] sm:$0xff]
    %v112 = vld [vmem:[#allocation8 + $0x88] sm:$0xff]
    %v113 = vld [vmem:[#allocation8 + $0x90] sm:$0xff]
    %v114 = vld [vmem:[#allocation8 + $0x98] sm:$0xff]
    %v115 = vld [vmem:[#allocation8 + $0xa0] sm:$0xff]
    %v116 = vld [vmem:[#allocation8 + $0xa8] sm:$0xff]
    %v117 = vld [vmem:[#allocation8 + $0xb0] sm:$0xff]
    %v118 = vld [vmem:[#allocation8 + $0xb8] sm:$0xff]
    %v119 = vld [vmem:[#allocation8 + $0xc0] sm:$0xff]
    %v120 = vld [vmem:[#allocation8 + $0xc8] sm:$0xff]
    %v121 = vld [vmem:[#allocation8 + $0xd0] sm:$0xff]
    %v122 = vld [vmem:[#allocation8 + $0xd8] sm:$0xff]
    %v123 = vld [vmem:[#allocation8 + $0xe0] sm:$0xff]
    %v124 = vld [vmem:[#allocation8 + $0xe8] sm:$0xff]
    %v125 = vld [vmem:[#allocation8 + $0xf0] sm:$0xff]
    %v126 = vld [vmem:[#allocation8 + $0xf8] sm:$0xff]
    %v127 = vld [vmem:[#allocation8 + $0x100] sm:$0xff]
    %v128 = vld [vmem:[#allocation8 + $0x108] sm:$0xff]
    %v129 = vld [vmem:[#allocation2] sm:$0xff]
    %v130 = vperm.slane %v93, 0
    %vm131 = vcmask 523264
    %v133 = vsel %vm131, %v129, 0
    %135 = vmatpush.msra.mxu0 0.0
    %136 = vmatpush.msra.mxu0 0.0
    %137 = vmatpush.msra.mxu0 0.0
    %138 = vmatpush.msra.mxu0 0.0
    %139 = vmatpush.msra.mxu0 0.0
    %140 = vmatpush.msra.mxu0 0.0
    %141 = vmatpush.msra.mxu0 0.0
    %142 = vmatpush.msra.mxu0 0.0
    %143 = vmatpush.msra.mxu0 %v102
    %144 = vmatpush.msra.mxu0 %v101
    %145 = vmatpush.msra.mxu0 %v100
    %146 = vmatpush.msra.mxu0 %v99
    %147 = vmatpush.msra.mxu0 %v98
    %148 = vmatpush.msra.mxu0 %v97
    %149 = vmatpush.msra.mxu0 %v96
    %150 = vmatpush.msra.mxu0 %v95
    %151 = vmatmul.f32.gmra.mxu0 %v133
    %v152 = vpop.f32.mrf.mxu0
    %v153 = vadd.f32 %v130, %v152
    %154 = vdwg.mxu0
    %v155 = vmax.f32 %v153, 0.0
    %v156 = vperm.slane %v93, 1
    %v157 = vmul.f32 %v155, %v156
    %v158 = vperm.slane %v93, 2
    %v159 = vadd.f32 %v157, %v158
    %v160 = vld [vmem:[#allocation5] sm:$0xff]
    %v161 = vperm.slane %v93, 3
    %v163 = vsel %vm131, %v160, 0
    %165 = vmatpush.msra.mxu0 0.0
    %166 = vmatpush.msra.mxu0 0.0
    %167 = vmatpush.msra.mxu0 0.0
    %168 = vmatpush.msra.mxu0 0.0
    %169 = vmatpush.msra.mxu0 0.0
    %170 = vmatpush.msra.mxu0 0.0
    %171 = vmatpush.msra.mxu0 0.0
    %172 = vmatpush.msra.mxu0 0.0
    %173 = vmatpush.msra.mxu0 %v110
    %174 = vmatpush.msra.mxu0 %v109
    %175 = vmatpush.msra.mxu0 %v108
    %176 = vmatpush.msra.mxu0 %v107
    %177 = vmatpush.msra.mxu0 %v106
    %178 = vmatpush.msra.mxu0 %v105
    %179 = vmatpush.msra.mxu0 %v104
    %180 = vmatpush.msra.mxu0 %v103
    %181 = vmatmul.f32.gmra.mxu0 %v163
    %v182 = vpop.f32.mrf.mxu0
    %v183 = vadd.f32 %v161, %v182
    %184 = vdwg.mxu0
    %v185 = vmax.f32 %v183, 0.0
    %v186 = vperm.slane %v93, 4
    %v187 = vmul.f32 %v185, %v186
    %v188 = vperm.slane %v93, 5
    %v189 = vadd.f32 %v187, %v188
    %vm190 = vcmask 261120
    %v192 = vsel %vm190, %v189, 0
    %194 = vmatpush.msra.mxu0 0.0
    %195 = vmatpush.msra.mxu0 0.0
    %196 = vmatpush.msra.mxu0 0.0
    %197 = vmatpush.msra.mxu0 0.0
    %198 = vmatpush.msra.mxu0 0.0
    %199 = vmatpush.msra.mxu0 0.0
    %200 = vmatpush.msra.mxu0 0.0
    %201 = vmatpush.msra.mxu0 0.0
    %202 = vmatpush.msra.mxu0 0.0
    %203 = vmatpush.msra.mxu0 0.0
    %204 = vmatpush.msra.mxu0 0.0
    %205 = vmatpush.msra.mxu0 0.0
    %206 = vmatpush.msra.mxu0 %v118
    %207 = vmatpush.msra.mxu0 %v117
    %208 = vmatpush.msra.mxu0 %v116
    %209 = vmatpush.msra.mxu0 %v115
    %210 = vmatmul.f32.gmra.mxu0 %v192
    %v211 = vpop.f32.mrf.mxu0
    %v212 = vadd.f32 0.0, %v211
    %213 = vdwg.mxu0
    %v215 = vsel %vm190, %v159, 0
    %217 = vmatpush.msra.mxu0 0.0
    %218 = vmatpush.msra.mxu0 0.0
    %219 = vmatpush.msra.mxu0 0.0
    %220 = vmatpush.msra.mxu0 0.0
    %221 = vmatpush.msra.mxu0 0.0
    %222 = vmatpush.msra.mxu0 0.0
    %223 = vmatpush.msra.mxu0 0.0
    %224 = vmatpush.msra.mxu0 0.0
    %225 = vmatpush.msra.mxu0 0.0
    %226 = vmatpush.msra.mxu0 0.0
    %227 = vmatpush.msra.mxu0 0.0
    %228 = vmatpush.msra.mxu0 0.0
    %229 = vmatpush.msra.mxu0 %v114
    %230 = vmatpush.msra.mxu0 %v113
    %231 = vmatpush.msra.mxu0 %v112
    %232 = vmatpush.msra.mxu0 %v111
    %233 = vmatmul.f32.gmra.mxu0 %v215
    %v234 = vpop.f32.mrf.mxu0
    %v235 = vadd.f32 %v212, %v234
    %236 = vdwg.mxu0
    %v237 = vperm.slane %v93, 6
    %v238 = vadd.f32 %v235, %v237
    %vm239 = vcmask 130048
    %v240 = vsel %vm239, %v238, -inf
    %241 = vmax.xlane.f32.xlu0 %v240
    %v242 = vpop.xlane.xlu0 %241
    %v243 = vsub.f32 %v238, %v242
    %v244 = vmul.f32 %v243, 1.442695
    %v245 = vpow.pop %v244
    %v246 = vsel %vm239, %v245, 0.0
    %247 = vadd.xlane.f32.xlu0 %v246
    %v248 = vpop.xlane.xlu0 %247
    %v249 = vrcp.pop %v248
    %v250 = vmul.f32 %v248, %v249
    %v251 = vsub.f32 1.0, %v250
    %v252 = vmul.f32 %v249, %v251
    %v253 = vadd.f32 %v249, %v252
    %vm254 = vweird.f32 %v248
    %vm255 = vweird.f32 %v249
    %vm256 = vmor %vm254, %vm255
    %v257 = vsel %vm256, %v249, %v253
    %v258 = vand.u32 2147483647, %v248
    %vm259 = vcmp.eq.f32.partialorder %v258, 8.507059e+37
    %v260 = vand.u32 %v248, 2147483648
    %v261 = vor.u32 1.1754944e-38, %v260
    %v262 = vsel %vm259, %v261, %v257
    %v263 = vmul.f32 %v245, %v262
    %v264 = vperm.slane %v93, 7
    %v266 = vsel %vm239, %v263, 0
    %268 = vmatpush.msra.mxu0 0.0
    %269 = vmatpush.msra.mxu0 0.0
    %270 = vmatpush.msra.mxu0 0.0
    %271 = vmatpush.msra.mxu0 0.0
    %272 = vmatpush.msra.mxu0 0.0
    %273 = vmatpush.msra.mxu0 0.0
    %274 = vmatpush.msra.mxu0 0.0
    %275 = vmatpush.msra.mxu0 0.0
    %276 = vmatpush.msra.mxu0 0.0
    %277 = vmatpush.msra.mxu0 0.0
    %278 = vmatpush.msra.mxu0 0.0
    %279 = vmatpush.msra.mxu0 0.0
    %280 = vmatpush.msra.mxu0 0.0
    %281 = vmatpush.msra.mxu0 0.0
    %282 = vmatpush.msra.mxu0 %v120
    %283 = vmatpush.msra.mxu0 %v119
    %284 = vmatmul.f32.gmra.mxu0 %v266
    %v285 = vpop.f32.mrf.mxu0
    %v286 = vadd.f32 %v264, %v285
    %287 = vdwg.mxu0
    %v288 = vsel %vm190, %v286, -inf
    %289 = vmax.xlane.f32.xlu0 %v288
    %v290 = vpop.xlane.xlu0 %289
    %v291 = vsub.f32 %v286, %v290
    %v292 = vmul.f32 %v291, 1.442695
    %v293 = vpow.pop %v292
    %v294 = vsel %vm190, %v293, 0.0
    %295 = vadd.xlane.f32.xlu0 %v294
    %v296 = vpop.xlane.xlu0 %295
    %v297 = vrcp.pop %v296
    %v298 = vmul.f32 %v296, %v297
    %v299 = vsub.f32 1.0, %v298
    %v300 = vmul.f32 %v297, %v299
    %v301 = vadd.f32 %v297, %v300
    %vm302 = vweird.f32 %v296
    %vm303 = vweird.f32 %v297
    %vm304 = vmor %vm302, %vm303
    %v305 = vsel %vm304, %v297, %v301
    %v306 = vand.u32 2147483647, %v296
    %vm307 = vcmp.eq.f32.partialorder %v306, 8.507059e+37
    %v308 = vand.u32 %v296, 2147483648
    %v309 = vor.u32 1.1754944e-38, %v308
    %v310 = vsel %vm307, %v309, %v305
    %v311 = vmul.f32 %v293, %v310
    %v312 = vmul.f32 %v159, %v311
    %v313 = vld [vmem:[#allocation7] sm:$0xff]
    %vm314 = vcmask 64512
    %v316 = vsel %vm314, %v313, 0
    %318 = vmatpush.msra.mxu0 0.0
    %319 = vmatpush.msra.mxu0 0.0
    %320 = vmatpush.msra.mxu0 0.0
    %321 = vmatpush.msra.mxu0 0.0
    %322 = vmatpush.msra.mxu0 0.0
    %323 = vmatpush.msra.mxu0 0.0
    %324 = vmatpush.msra.mxu0 0.0
    %325 = vmatpush.msra.mxu0 0.0
    %326 = vmatpush.msra.mxu0 0.0
    %327 = vmatpush.msra.mxu0 0.0
    %328 = vmatpush.msra.mxu0 0.0
    %329 = vmatpush.msra.mxu0 0.0
    %330 = vmatpush.msra.mxu0 0.0
    %331 = vmatpush.msra.mxu0 0.0
    %332 = vmatpush.msra.mxu0 0.0
    %333 = vmatpush.msra.mxu0 %v125
    %334 = vmatmul.f32.gmra.mxu0 %v316
    %v335 = vpop.f32.mrf.mxu0
    %v336 = vadd.f32 0.0, %v335
    %337 = vdwg.mxu0
    %v339 = vsel %vm190, %v312, 0
    %341 = vmatpush.msra.mxu0 0.0
    %342 = vmatpush.msra.mxu0 0.0
    %343 = vmatpush.msra.mxu0 0.0
    %344 = vmatpush.msra.mxu0 0.0
    %345 = vmatpush.msra.mxu0 0.0
    %346 = vmatpush.msra.mxu0 0.0
    %347 = vmatpush.msra.mxu0 0.0
    %348 = vmatpush.msra.mxu0 0.0
    %349 = vmatpush.msra.mxu0 0.0
    %350 = vmatpush.msra.mxu0 0.0
    %351 = vmatpush.msra.mxu0 0.0
    %352 = vmatpush.msra.mxu0 0.0
    %353 = vmatpush.msra.mxu0 %v124
    %354 = vmatpush.msra.mxu0 %v123
    %355 = vmatpush.msra.mxu0 %v122
    %356 = vmatpush.msra.mxu0 %v121
    %357 = vmatmul.f32.gmra.mxu0 %v339
    %v358 = vpop.f32.mrf.mxu0
    %v359 = vadd.f32 %v336, %v358
    %360 = vdwg.mxu0
    %v361 = vperm.slane %v94, 0
    %v362 = vadd.f32 %v359, %v361
    %v363 = vmax.f32 %v362, 0.0
    %v364 = vperm.slane %v94, 1
    %v366 = vsel %vm239, %v363, 0
    %368 = vmatpush.msra.mxu0 0.0
    %369 = vmatpush.msra.mxu0 0.0
    %370 = vmatpush.msra.mxu0 0.0
    %371 = vmatpush.msra.mxu0 0.0
    %372 = vmatpush.msra.mxu0 0.0
    %373 = vmatpush.msra.mxu0 0.0
    %374 = vmatpush.msra.mxu0 0.0
    %375 = vmatpush.msra.mxu0 0.0
    %376 = vmatpush.msra.mxu0 0.0
    %377 = vmatpush.msra.mxu0 0.0
    %378 = vmatpush.msra.mxu0 0.0
    %379 = vmatpush.msra.mxu0 0.0
    %380 = vmatpush.msra.mxu0 0.0
    %381 = vmatpush.msra.mxu0 0.0
    %382 = vmatpush.msra.mxu0 %v127
    %383 = vmatpush.msra.mxu0 %v126
    %384 = vmatmul.f32.gmra.mxu0 %v366
    %v385 = vpop.f32.mrf.mxu0
    %v386 = vadd.f32 %v364, %v385
    %387 = vdwg.mxu0
    %v388 = vmax.f32 %v386, 0.0
    %v389 = vperm.slane %v94, 2
    %v391 = vsel %vm314, %v388, 0
    %393 = vmatpush.msra.mxu0 0.0
    %394 = vmatpush.msra.mxu0 0.0
    %395 = vmatpush.msra.mxu0 0.0
    %396 = vmatpush.msra.mxu0 0.0
    %397 = vmatpush.msra.mxu0 0.0
    %398 = vmatpush.msra.mxu0 0.0
    %399 = vmatpush.msra.mxu0 0.0
    %400 = vmatpush.msra.mxu0 0.0
    %401 = vmatpush.msra.mxu0 0.0
    %402 = vmatpush.msra.mxu0 0.0
    %403 = vmatpush.msra.mxu0 0.0
    %404 = vmatpush.msra.mxu0 0.0
    %405 = vmatpush.msra.mxu0 0.0
    %406 = vmatpush.msra.mxu0 0.0
    %407 = vmatpush.msra.mxu0 0.0
    %408 = vmatpush.msra.mxu0 %v128
    %409 = vmatmul.f32.gmra.mxu0 %v391
    %v410 = vpop.f32.mrf.mxu0
    %v411 = vadd.f32 %v389, %v410
    %412 = vdwg.mxu0
    %413 = vst [vmem:[#allocation11] sm:$0xff] %v411
    // Predicated region
    $region42: #{tpu_custom_call.1} parent=1 // pred_check
      _
    $region43: #{tpu_custom_call.1} parent=1 // pred_check_branch
      %415 = sbr.rel (0) target = $region45
    $region44: #{tpu_custom_call.1} parent=1 // pred_region
      %417 = vsyncadd [#allocation4], 0
      %s419 = sshll.u32 [#allocation11], 4
      %s420 = int_to_ptr.vmem [resolvable:$true] %s419
      %s421 = sshll.u32 %s5, 4
      %s422 = int_to_ptr.hbm [resolvable:$true] %s421
      %424 = dma.vmem_to_hbm [thread:$0]  %s420, 128, %s422, [#allocation4]
    $region45: #{tpu_custom_call.1} parent=1 // pred_fallthru
      _
    // Predicated region
    $region46: #{tpu_custom_call.1} parent=1 // pred_check
      _
    $region47: #{tpu_custom_call.1} parent=1 // pred_check_branch
      %426 = sbr.rel (0) target = $region49
    $region48: #{tpu_custom_call.1} parent=1 // pred_region
      %428 = dma.done [#allocation4], 128
    $region49: #{tpu_custom_call.1} parent=1 // pred_fallthru
      _
    %429 = vsyncpa [#allocation3], 1
    %430 = vsyncpa [#allocation6], 1
    %431 = vsyncpa [#allocation9], 1
    %432 = vsyncpa [#allocation4], 1

</llo_original>
